<compile_context>
chip_gen: v7x
topology: tpu7x:2x2x1
jax: 0.10.0
libtpu: 0.0.40
codegen_flags: <defaults>
</compile_context>

<pallas_src>
import jax
import jax.numpy as jnp
from jax.experimental import pallas as pl
from jax.experimental.pallas import tpu as pltpu

EPS = 1e-5  # PyTorch BatchNorm1d default eps


def _round_up(n, m):
    return ((n + m - 1) // m) * m


def _cdiv(a, b):
    return (a + b - 1) // b


# ----------------------------------------------------------------------------
# Kernel
# ----------------------------------------------------------------------------
def fnn4_kernel(x_ref,
                w1_ref, b1_ref,          # feature_extractor Linear (BN1 folded), bf16 / f32
                wr_ref, br_ref,          # residual Linear
                w2_ref, b2_ref,          # noise-branch Linear (BN2 folded)
                w3a_ref, w3b_ref, b3_ref,  # combined Linear, split over the concat axis (BN3 folded)
                w4_ref, b4_ref,          # final Linear
                out_ref):
    x = x_ref[...]  # already bf16

    # feature_extractor: Linear (+BN folded, bf16 operands, f32 accum) -> ReLU (f32)
    features = jnp.maximum(
        jnp.dot(x, w1_ref[...], preferred_element_type=jnp.float32) + b1_ref[...],
        0.0)
    f_bf16 = features.astype(jnp.bfloat16)

    # residual branch: features + Linear(features)
    refined = features + (
        jnp.dot(f_bf16, wr_ref[...], preferred_element_type=jnp.float32) + br_ref[...])

    # noise branch: tanh(BN(Linear(features)))  (Dropout is identity in eval mode)
    # TODO(synk): Dropout in training mode (stochastic masking) not implemented; eval-mode identity used.
    noise = jnp.tanh(
        jnp.dot(f_bf16, w2_ref[...], preferred_element_type=jnp.float32) + b2_ref[...])

    # combined[0..2]: Linear(concat(refined, noise)) (+BN folded) -> ReLU, as a split matmul.
    c = jnp.maximum(
        jnp.dot(refined.astype(jnp.bfloat16), w3a_ref[...], preferred_element_type=jnp.float32)
        + jnp.dot(noise.astype(jnp.bfloat16), w3b_ref[...], preferred_element_type=jnp.float32)
        + b3_ref[...],
        0.0)

    # combined[3]: final Linear; output is written at its true width (no lane padding).
    out_ref[...] = (
        jnp.dot(c.astype(jnp.bfloat16), w4_ref[...], preferred_element_type=jnp.float32)
        + b4_ref[...])


# ----------------------------------------------------------------------------
# Wrapper-side parameter algebra (done once, outside the kernel)
# ----------------------------------------------------------------------------
def _fold_bn(w, b, g, be, m, v):
    scale = g * jax.lax.rsqrt(v + EPS)          # (1, out)
    return w * scale, (b - m) * scale + be


def prepare_kernel_params(p):
    """Fold BN into the preceding Linears; weights -> bf16, biases stay f32."""
    w1, b1 = _fold_bn(p["w1"], p["b1"], p["g1"], p["be1"], p["m1"], p["v1"])
    w2, b2 = _fold_bn(p["w2"], p["b2"], p["g2"], p["be2"], p["m2"], p["v2"])
    w3a, b3 = _fold_bn(p["w3a"], p["b3"], p["g3"], p["be3"], p["m3"], p["v3"])
    w3b, _ = _fold_bn(p["w3b"], jnp.zeros_like(p["b3"]),
                      p["g3"], jnp.zeros_like(p["be3"]),
                      jnp.zeros_like(p["m3"]), p["v3"])

    bf = jnp.bfloat16
    return [w1.astype(bf), b1,
            p["wr"].astype(bf), p["br"],
            w2.astype(bf), b2,
            w3a.astype(bf), w3b.astype(bf), b3,
            p["w4"].astype(bf), p["b4"]]


# ----------------------------------------------------------------------------
# pallas_call wrapper
# ----------------------------------------------------------------------------
def fiber_optic_fnn4(x, params, *, batch_tile=512):
    B, input_dim = x.shape
    hidden = params["w1"].shape[1]
    hd2 = params["w2"].shape[1]
    output_dim = params["w4"].shape[1]

    kparams = prepare_kernel_params(params)
    param_bytes = sum(int(p.size) * p.dtype.itemsize for p in kparams)

    # --- batch tiling -------------------------------------------------------
    # Pad only to a sublane multiple (8), then balance rows across grid steps
    # (bounded padding waste).  Force >= 2 grid steps when the batch would fit
    # in a single tile so that v7x's two TensorCores both get work.
    Bp8 = _round_up(B, 8)
    nsteps = max(1, _cdiv(Bp8, batch_tile))
    if nsteps == 1 and Bp8 >= 16:
        nsteps = 2
    tile = _round_up(_cdiv(Bp8, nsteps), 8)
    Bp = tile * nsteps
    grid = (nsteps,)

    xp = x.astype(jnp.bfloat16)
    if Bp != B:
        xp = jnp.pad(xp, ((0, Bp - B), (0, 0)))

    # --- BlockSpecs ----------------------------------------------------------
    # Small parameters: replicate the full array into VMEM (constant index_map
    # -> no re-DMA across grid steps).  For large parameter sets, disable the
    # useless double-buffering of these never-refetched blocks (v7x VMEM).
    if param_bytes > (8 << 20):
        param_specs = [pl.BlockSpec(p.shape, lambda i: (0, 0),
                                    pipeline_mode=pl.Buffered(1))
                       for p in kparams]
        param_buf_factor = 1
    else:
        param_specs = [pl.BlockSpec(p.shape, lambda i: (0, 0)) for p in kparams]
        param_buf_factor = 2

    x_spec = pl.BlockSpec((tile, input_dim), lambda i: (i, 0))
    out_spec = pl.BlockSpec((tile, output_dim), lambda i: (i, 0))
    # NOTE: if DMA latency is ever exposed (tiny per-step compute), deepen the
    # x prefetch with pipeline_mode=pl.Buffered(3) on x_spec.

    # --- VMEM budget ---------------------------------------------------------
    x_tile_bytes = tile * input_dim * 2           # bf16 input tile
    out_tile_bytes = tile * output_dim * 4        # f32 output tile
    interm_bytes = 10 * tile * max(hidden + hd2, input_dim, output_dim) * 4
    vmem_est = (param_buf_factor * param_bytes
                + 2 * x_tile_bytes + 2 * out_tile_bytes + interm_bytes)
    vmem_limit = int(min(64 << 20, max(16 << 20, 2 * vmem_est)))

    # --- cost estimate -------------------------------------------------------
    flops = 2 * Bp * (input_dim * hidden
                      + hidden * hidden          # residual
                      + hidden * hd2             # noise branch
                      + hidden * hidden          # refined @ w3a
                      + hd2 * hidden             # noise @ w3b
                      + hidden * output_dim)
    bytes_accessed = 2 * Bp * input_dim + 4 * Bp * output_dim + param_bytes
    cost = pl.CostEstimate(flops=flops,
                           transcendentals=Bp * hd2,   # tanh
                           bytes_accessed=bytes_accessed)

    out = pl.pallas_call(
        fnn4_kernel,
        out_shape=jax.ShapeDtypeStruct((Bp, output_dim), jnp.float32),
        grid_spec=pltpu.PrefetchScalarGridSpec(
            num_scalar_prefetch=0,
            grid=grid,
            in_specs=[x_spec] + param_specs,
            out_specs=out_spec,
        ),
        compiler_params=pltpu.CompilerParams(
            dimension_semantics=("parallel",),
            vmem_limit_bytes=vmem_limit),
        cost_estimate=cost,
    )(xp, *kparams)

    return out[:B, :]


# ----------------------------------------------------------------------------
# Deterministic init mirroring FiberOpticFNN4.__init__ shapes (raw, unfused)
# ----------------------------------------------------------------------------
def init_params(key, input_dim, hidden_dim, output_dim):
    hd2 = hidden_dim // 2
    ks = jax.random.split(key, 32)
    ki = iter(range(32))

    def linear(fan_in, fan_out):
        bound = 1.0 / (fan_in ** 0.5)
        w = jax.random.uniform(ks[next(ki)], (fan_in, fan_out), jnp.float32, -bound, bound)
        b = jax.random.uniform(ks[next(ki)], (1, fan_out), jnp.float32, -bound, bound)
        return w, b

    def batchnorm(dim):
        g = jax.random.uniform(ks[next(ki)], (1, dim), jnp.float32, 0.5, 1.5)
        be = 0.1 * jax.random.normal(ks[next(ki)], (1, dim), jnp.float32)
        m = 0.1 * jax.random.normal(ks[next(ki)], (1, dim), jnp.float32)
        v = jax.random.uniform(ks[next(ki)], (1, dim), jnp.float32, 0.5, 1.5)
        return g, be, m, v

    w1, b1 = linear(input_dim, hidden_dim)
    g1, be1, m1, v1 = batchnorm(hidden_dim)
    w2, b2 = linear(hidden_dim, hd2)
    g2, be2, m2, v2 = batchnorm(hd2)
    wr, br = linear(hidden_dim, hidden_dim)
    w3, b3 = linear(hidden_dim + hd2, hidden_dim)
    w3a, w3b = w3[:hidden_dim, :], w3[hidden_dim:, :]
    g3, be3, m3, v3 = batchnorm(hidden_dim)
    w4, b4 = linear(hidden_dim, output_dim)

    return dict(w1=w1, b1=b1, g1=g1, be1=be1, m1=m1, v1=v1,
                w2=w2, b2=b2, g2=g2, be2=be2, m2=m2, v2=v2,
                wr=wr, br=br,
                w3a=w3a, w3b=w3b, b3=b3, g3=g3, be3=be3, m3=m3, v3=v3,
                w4=w4, b4=b4)


def reference_forward(x, p):
    """Pure-JAX f32 reference of the PyTorch forward (eval mode, unfused)."""
    def bn(h, g, be, m, v):
        return (h - m) * jax.lax.rsqrt(v + EPS) * g + be

    features = jnp.maximum(bn(x @ p["w1"] + p["b1"], p["g1"], p["be1"], p["m1"], p["v1"]), 0.0)
    noise = jnp.tanh(bn(features @ p["w2"] + p["b2"], p["g2"], p["be2"], p["m2"], p["v2"]))
    refined = features + (features @ p["wr"] + p["br"])
    combined = jnp.concatenate([refined, noise], axis=1)
    w3 = jnp.concatenate([p["w3a"], p["w3b"]], axis=0)
    c = jnp.maximum(bn(combined @ w3 + p["b3"], p["g3"], p["be3"], p["m3"], p["v3"]), 0.0)
    return c @ p["w4"] + p["b4"]


if __name__ == "__main__":
    # Small deterministic example; batch deliberately not a multiple of the tile
    # to exercise the padding + multi-step (dual-TC) grid path.
    batch, input_dim, hidden_dim, output_dim = 20, 16, 32, 4

    key = jax.random.PRNGKey(0)
    kx, kp = jax.random.split(key)
    x = jax.random.normal(kx, (batch, input_dim), jnp.float32)
    params = init_params(kp, input_dim, hidden_dim, output_dim)

    out = fiber_optic_fnn4(x, params)
    out = jax.block_until_ready(out)

    ref = reference_forward(x, params)
    assert out.shape == (batch, output_dim)
    # bf16 MXU operands with f32 accumulation: loosen tolerance vs f32 reference.
    assert jnp.allclose(out, ref, atol=5e-2, rtol=5e-2), "mismatch vs pure-JAX reference"

    print("KERNEL_OK")
</pallas_src>

<mosaic_0001>
module attributes {stable_mosaic.version = 11 : i64} {
  func.func @fnn4_kernel(%arg0: i32, %arg1: memref<16x16xbf16, #tpu.memory_space<vmem>>, %arg2: memref<16x32xbf16, #tpu.memory_space<vmem>>, %arg3: memref<1x32xf32, #tpu.memory_space<vmem>>, %arg4: memref<32x32xbf16, #tpu.memory_space<vmem>>, %arg5: memref<1x32xf32, #tpu.memory_space<vmem>>, %arg6: memref<32x16xbf16, #tpu.memory_space<vmem>>, %arg7: memref<1x16xf32, #tpu.memory_space<vmem>>, %arg8: memref<32x32xbf16, #tpu.memory_space<vmem>>, %arg9: memref<16x32xbf16, #tpu.memory_space<vmem>>, %arg10: memref<1x32xf32, #tpu.memory_space<vmem>>, %arg11: memref<32x4xbf16, #tpu.memory_space<vmem>>, %arg12: memref<1x4xf32, #tpu.memory_space<vmem>>, %arg13: memref<16x4xf32, #tpu.memory_space<vmem>>) attributes {dimension_semantics = [#tpu.dimension_semantics<parallel>], iteration_bounds = array<i64: 2>, scalar_prefetch = 0 : i64, scratch_operands = 0 : i64, tpu.core_type = #tpu.core_type<tc>, window_params = [{transform_indices = @transform_0, window_bounds = array<i64: 16, 16>}, {pipeline_mode = #tpu.pipeline_mode<synchronous>, transform_indices = @transform_1, window_bounds = array<i64: 16, 32>}, {pipeline_mode = #tpu.pipeline_mode<synchronous>, transform_indices = @transform_2, window_bounds = array<i64: 1, 32>}, {pipeline_mode = #tpu.pipeline_mode<synchronous>, transform_indices = @transform_3, window_bounds = array<i64: 32, 32>}, {pipeline_mode = #tpu.pipeline_mode<synchronous>, transform_indices = @transform_4, window_bounds = array<i64: 1, 32>}, {pipeline_mode = #tpu.pipeline_mode<synchronous>, transform_indices = @transform_5, window_bounds = array<i64: 32, 16>}, {pipeline_mode = #tpu.pipeline_mode<synchronous>, transform_indices = @transform_6, window_bounds = array<i64: 1, 16>}, {pipeline_mode = #tpu.pipeline_mode<synchronous>, transform_indices = @transform_7, window_bounds = array<i64: 32, 32>}, {pipeline_mode = #tpu.pipeline_mode<synchronous>, transform_indices = @transform_8, window_bounds = array<i64: 16, 32>}, {pipeline_mode = #tpu.pipeline_mode<synchronous>, transform_indices = @transform_9, window_bounds = array<i64: 1, 32>}, {pipeline_mode = #tpu.pipeline_mode<synchronous>, transform_indices = @transform_10, window_bounds = array<i64: 32, 4>}, {pipeline_mode = #tpu.pipeline_mode<synchronous>, transform_indices = @transform_11, window_bounds = array<i64: 1, 4>}, {transform_indices = @transform_12, window_bounds = array<i64: 16, 4>}]} {
    %c0 = arith.constant 0 : index
    %c0_0 = arith.constant 0 : index
    %0 = vector.load %arg1[%c0, %c0_0] : memref<16x16xbf16, #tpu.memory_space<vmem>>, vector<16x16xbf16>
    %c0_1 = arith.constant 0 : index
    %c0_2 = arith.constant 0 : index
    %1 = vector.load %arg2[%c0_1, %c0_2] : memref<16x32xbf16, #tpu.memory_space<vmem>>, vector<16x32xbf16>
    %cst = arith.constant dense<0.000000e+00> : vector<16x32xf32>
    %2 = tpu.matmul %0, %1, %cst {dimension_numbers = #tpu.dot_dimension_numbers<[1], [0], [0], [1], [0, 0, 1, 1], [], []>} : vector<16x16xbf16>, vector<16x32xbf16>, vector<16x32xf32> -> vector<16x32xf32>
    %c0_3 = arith.constant 0 : index
    %c0_4 = arith.constant 0 : index
    %3 = vector.load %arg3[%c0_3, %c0_4] : memref<1x32xf32, #tpu.memory_space<vmem>>, vector<1x32xf32>
    %4 = vector.broadcast %3 : vector<1x32xf32> to vector<16x32xf32>
    %5 = arith.addf %2, %4 : vector<16x32xf32>
    %cst_5 = arith.constant 0.000000e+00 : f32
    %6 = vector.broadcast %cst_5 : f32 to vector<16x32xf32>
    %7 = arith.maximumf %5, %6 : vector<16x32xf32>
    %8 = arith.truncf %7 : vector<16x32xf32> to vector<16x32xbf16>
    %c0_6 = arith.constant 0 : index
    %c0_7 = arith.constant 0 : index
    %9 = vector.load %arg4[%c0_6, %c0_7] : memref<32x32xbf16, #tpu.memory_space<vmem>>, vector<32x32xbf16>
    %cst_8 = arith.constant dense<0.000000e+00> : vector<16x32xf32>
    %10 = tpu.matmul %8, %9, %cst_8 {dimension_numbers = #tpu.dot_dimension_numbers<[1], [0], [0], [1], [0, 0, 1, 1], [], []>} : vector<16x32xbf16>, vector<32x32xbf16>, vector<16x32xf32> -> vector<16x32xf32>
    %c0_9 = arith.constant 0 : index
    %c0_10 = arith.constant 0 : index
    %11 = vector.load %arg5[%c0_9, %c0_10] : memref<1x32xf32, #tpu.memory_space<vmem>>, vector<1x32xf32>
    %12 = vector.broadcast %11 : vector<1x32xf32> to vector<16x32xf32>
    %13 = arith.addf %10, %12 : vector<16x32xf32>
    %14 = arith.addf %7, %13 : vector<16x32xf32>
    %c0_11 = arith.constant 0 : index
    %c0_12 = arith.constant 0 : index
    %15 = vector.load %arg6[%c0_11, %c0_12] : memref<32x16xbf16, #tpu.memory_space<vmem>>, vector<32x16xbf16>
    %cst_13 = arith.constant dense<0.000000e+00> : vector<16x16xf32>
    %16 = tpu.matmul %8, %15, %cst_13 {dimension_numbers = #tpu.dot_dimension_numbers<[1], [0], [0], [1], [0, 0, 1, 1], [], []>} : vector<16x32xbf16>, vector<32x16xbf16>, vector<16x16xf32> -> vector<16x16xf32>
    %c0_14 = arith.constant 0 : index
    %c0_15 = arith.constant 0 : index
    %17 = vector.load %arg7[%c0_14, %c0_15] : memref<1x16xf32, #tpu.memory_space<vmem>>, vector<1x16xf32>
    %18 = vector.broadcast %17 : vector<1x16xf32> to vector<16x16xf32>
    %19 = arith.addf %16, %18 : vector<16x16xf32>
    %20 = math.tanh %19 : vector<16x16xf32>
    %21 = arith.truncf %14 : vector<16x32xf32> to vector<16x32xbf16>
    %c0_16 = arith.constant 0 : index
    %c0_17 = arith.constant 0 : index
    %22 = vector.load %arg8[%c0_16, %c0_17] : memref<32x32xbf16, #tpu.memory_space<vmem>>, vector<32x32xbf16>
    %cst_18 = arith.constant dense<0.000000e+00> : vector<16x32xf32>
    %23 = tpu.matmul %21, %22, %cst_18 {dimension_numbers = #tpu.dot_dimension_numbers<[1], [0], [0], [1], [0, 0, 1, 1], [], []>} : vector<16x32xbf16>, vector<32x32xbf16>, vector<16x32xf32> -> vector<16x32xf32>
    %24 = arith.truncf %20 : vector<16x16xf32> to vector<16x16xbf16>
    %c0_19 = arith.constant 0 : index
    %c0_20 = arith.constant 0 : index
    %25 = vector.load %arg9[%c0_19, %c0_20] : memref<16x32xbf16, #tpu.memory_space<vmem>>, vector<16x32xbf16>
    %cst_21 = arith.constant dense<0.000000e+00> : vector<16x32xf32>
    %26 = tpu.matmul %24, %25, %cst_21 {dimension_numbers = #tpu.dot_dimension_numbers<[1], [0], [0], [1], [0, 0, 1, 1], [], []>} : vector<16x16xbf16>, vector<16x32xbf16>, vector<16x32xf32> -> vector<16x32xf32>
    %27 = arith.addf %23, %26 : vector<16x32xf32>
    %c0_22 = arith.constant 0 : index
    %c0_23 = arith.constant 0 : index
    %28 = vector.load %arg10[%c0_22, %c0_23] : memref<1x32xf32, #tpu.memory_space<vmem>>, vector<1x32xf32>
    %29 = vector.broadcast %28 : vector<1x32xf32> to vector<16x32xf32>
    %30 = arith.addf %27, %29 : vector<16x32xf32>
    %cst_24 = arith.constant 0.000000e+00 : f32
    %31 = vector.broadcast %cst_24 : f32 to vector<16x32xf32>
    %32 = arith.maximumf %30, %31 : vector<16x32xf32>
    %33 = arith.truncf %32 : vector<16x32xf32> to vector<16x32xbf16>
    %c0_25 = arith.constant 0 : index
    %c0_26 = arith.constant 0 : index
    %34 = vector.load %arg11[%c0_25, %c0_26] : memref<32x4xbf16, #tpu.memory_space<vmem>>, vector<32x4xbf16>
    %cst_27 = arith.constant dense<0.000000e+00> : vector<16x4xf32>
    %35 = tpu.matmul %33, %34, %cst_27 {dimension_numbers = #tpu.dot_dimension_numbers<[1], [0], [0], [1], [0, 0, 1, 1], [], []>} : vector<16x32xbf16>, vector<32x4xbf16>, vector<16x4xf32> -> vector<16x4xf32>
    %c0_28 = arith.constant 0 : index
    %c0_29 = arith.constant 0 : index
    %36 = vector.load %arg12[%c0_28, %c0_29] : memref<1x4xf32, #tpu.memory_space<vmem>>, vector<1x4xf32>
    %37 = vector.broadcast %36 : vector<1x4xf32> to vector<16x4xf32>
    %38 = arith.addf %35, %37 : vector<16x4xf32>
    %c0_30 = arith.constant 0 : index
    %c0_31 = arith.constant 0 : index
    %39 = vector.load %arg13[%c0_30, %c0_31] : memref<16x4xf32, #tpu.memory_space<vmem>>, vector<16x4xf32>
    tpu.vector_store %arg13[%c0_30, %c0_31], %38 {strides = array<i32>} : memref<16x4xf32, #tpu.memory_space<vmem>>, vector<16x4xf32>,
    return
  }
  func.func @transform_0(%arg0: i32) -> (i32, i32) {
    %c0_i32 = arith.constant 0 : i32
    %c0_i32_0 = arith.constant 0 : i32
    return %arg0, %c0_i32 : i32, i32
  }
  func.func @transform_1(%arg0: i32) -> (i32, i32) {
    %c0_i32 = arith.constant 0 : i32
    %c0_i32_0 = arith.constant 0 : i32
    %c0_i32_1 = arith.constant 0 : i32
    return %c0_i32, %c0_i32_0 : i32, i32
  }
  func.func @transform_2(%arg0: i32) -> (i32, i32) {
    %c0_i32 = arith.constant 0 : i32
    %c0_i32_0 = arith.constant 0 : i32
    %c0_i32_1 = arith.constant 0 : i32
    return %c0_i32, %c0_i32_0 : i32, i32
  }
  func.func @transform_3(%arg0: i32) -> (i32, i32) {
    %c0_i32 = arith.constant 0 : i32
    %c0_i32_0 = arith.constant 0 : i32
    %c0_i32_1 = arith.constant 0 : i32
    return %c0_i32, %c0_i32_0 : i32, i32
  }
  func.func @transform_4(%arg0: i32) -> (i32, i32) {
    %c0_i32 = arith.constant 0 : i32
    %c0_i32_0 = arith.constant 0 : i32
    %c0_i32_1 = arith.constant 0 : i32
    return %c0_i32, %c0_i32_0 : i32, i32
  }
  func.func @transform_5(%arg0: i32) -> (i32, i32) {
    %c0_i32 = arith.constant 0 : i32
    %c0_i32_0 = arith.constant 0 : i32
    %c0_i32_1 = arith.constant 0 : i32
    return %c0_i32, %c0_i32_0 : i32, i32
  }
  func.func @transform_6(%arg0: i32) -> (i32, i32) {
    %c0_i32 = arith.constant 0 : i32
    %c0_i32_0 = arith.constant 0 : i32
    %c0_i32_1 = arith.constant 0 : i32
    return %c0_i32, %c0_i32_0 : i32, i32
  }
  func.func @transform_7(%arg0: i32) -> (i32, i32) {
    %c0_i32 = arith.constant 0 : i32
    %c0_i32_0 = arith.constant 0 : i32
    %c0_i32_1 = arith.constant 0 : i32
    return %c0_i32, %c0_i32_0 : i32, i32
  }
  func.func @transform_8(%arg0: i32) -> (i32, i32) {
    %c0_i32 = arith.constant 0 : i32
    %c0_i32_0 = arith.constant 0 : i32
    %c0_i32_1 = arith.constant 0 : i32
    return %c0_i32, %c0_i32_0 : i32, i32
  }
  func.func @transform_9(%arg0: i32) -> (i32, i32) {
    %c0_i32 = arith.constant 0 : i32
    %c0_i32_0 = arith.constant 0 : i32
    %c0_i32_1 = arith.constant 0 : i32
    return %c0_i32, %c0_i32_0 : i32, i32
  }
  func.func @transform_10(%arg0: i32) -> (i32, i32) {
    %c0_i32 = arith.constant 0 : i32
    %c0_i32_0 = arith.constant 0 : i32
    %c0_i32_1 = arith.constant 0 : i32
    return %c0_i32, %c0_i32_0 : i32, i32
  }
  func.func @transform_11(%arg0: i32) -> (i32, i32) {
    %c0_i32 = arith.constant 0 : i32
    %c0_i32_0 = arith.constant 0 : i32
    %c0_i32_1 = arith.constant 0 : i32
    return %c0_i32, %c0_i32_0 : i32, i32
  }
  func.func @transform_12(%arg0: i32) -> (i32, i32) {
    %c0_i32 = arith.constant 0 : i32
    %c0_i32_0 = arith.constant 0 : i32
    return %arg0, %c0_i32 : i32, i32
  }
}

</mosaic_0001>

<llo_original>
// kernel: tpu_custom_call.1
$region0: #{tpu_custom_call.1}
  #allocation0 [shape = 'u32[]', space=smem, size = 0x4, offset = 0x4, fixed_abs, tag = 'smem constant byte address 0x4 - core index']
  #allocation1 [shape = 'u32[144,128]{1,0:T(1,128)}', space=vmem, size = 0x12000, scoped, tag = 'internal scratch']
  %s0 = inlined_call_operand.vmem [shape: bf16[32,16], index: 0, kind: input, shape index: {}]
  %s1 = inlined_call_operand.vmem [shape: bf16[16,32], index: 1, kind: input, shape index: {}]
  %s2 = inlined_call_operand.vmem [shape: f32[1,32], index: 2, kind: input, shape index: {}]
  %s3 = inlined_call_operand.vmem [shape: bf16[32,32], index: 3, kind: input, shape index: {}]
  %s4 = inlined_call_operand.vmem [shape: f32[1,32], index: 4, kind: input, shape index: {}]
  %s5 = inlined_call_operand.vmem [shape: bf16[32,16], index: 5, kind: input, shape index: {}]
  %s6 = inlined_call_operand.vmem [shape: f32[1,16], index: 6, kind: input, shape index: {}]
  %s7 = inlined_call_operand.vmem [shape: bf16[32,32], index: 7, kind: input, shape index: {}]
  %s8 = inlined_call_operand.vmem [shape: bf16[16,32], index: 8, kind: input, shape index: {}]
  %s9 = inlined_call_operand.vmem [shape: f32[1,32], index: 9, kind: input, shape index: {}]
  %s10 = inlined_call_operand.vmem [shape: bf16[32,4], index: 10, kind: input, shape index: {}]
  %s11 = inlined_call_operand.vmem [shape: f32[1,4], index: 11, kind: input, shape index: {}]
  %s12 = inlined_call_operand.vmem [shape: f32[32,4], index: 12, kind: output, shape index: {}]
  %s13 = sld [smem:[#allocation0]]
  $region81: #{tpu_custom_call.1} parent=0
    _
  %s15 = ssub.s32 1, %s13
  %s16 = scalar_select 0, %s15, %s13
  loop: start=0, step=1, limit=4
  $region2: #{tpu_custom_call.1} parent=0 // loop_pre_header
    _
  $region3: #{tpu_custom_call.1} parent=0 // loop_header
    %s18 = sphi 0, %s22
    %p19 = scmp.ge.s32.totalorder %s18, 4
    %s28 = sphi 0, %s30
    %s31 = sphi 0, %s28
    %s32 = sphi 0, %s31
    %s48 = sphi 0, %s32
    %s52 = sphi 0, %s52
    %s54 = sphi 0, %s52
    %s55 = sphi 0, %s54
    %s69 = sphi 0, %s55
    %s73 = sphi 0, %s73
    %s75 = sphi 0, %s73
    %s76 = sphi 0, %s75
    %s90 = sphi 0, %s76
    %s94 = sphi 0, %s94
    %s96 = sphi 0, %s94
    %s97 = sphi 0, %s96
    %s111 = sphi 0, %s97
    %s115 = sphi 0, %s115
    %s117 = sphi 0, %s115
    %s118 = sphi 0, %s117
    %s132 = sphi 0, %s118
    %s136 = sphi 0, %s136
    %s138 = sphi 0, %s136
    %s139 = sphi 0, %s138
    %s153 = sphi 0, %s139
    %s157 = sphi 0, %s157
    %s159 = sphi 0, %s157
    %s160 = sphi 0, %s159
    %s174 = sphi 0, %s160
    %s178 = sphi 0, %s178
    %s180 = sphi 0, %s178
    %s181 = sphi 0, %s180
    %s195 = sphi 0, %s181
    %s199 = sphi 0, %s199
    %s201 = sphi 0, %s199
    %s202 = sphi 0, %s201
    %s216 = sphi 0, %s202
    %s220 = sphi 0, %s220
    %s222 = sphi 0, %s220
    %s223 = sphi 0, %s222
    %s237 = sphi 0, %s223
    %s241 = sphi 0, %s241
    %s243 = sphi 0, %s241
    %s244 = sphi 0, %s243
    %s258 = sphi 0, %s244
    %s262 = sphi 0, %s262
    %s264 = sphi 0, %s262
    %s265 = sphi 0, %s264
    %s279 = sphi 0, %s265
    %s285 = sphi 0, %s287
    %s288 = sphi 0, %s285
    %s289 = sphi 0, %s288
    %s305 = sphi 0, %s289
  $region4: #{tpu_custom_call.1} parent=0 // loop_header_branch
    %21 = sbr.rel (%p19) target = $region8
  $region5: #{tpu_custom_call.1} parent=0 // loop_body
    %s23 = ssub.s32 %s18, 1
    %s24 = ssub.s32 %s18, 2
    %s25 = sadd.s32 %s18, 1
    %s26 = ssub.s32 %s18, %s25
    %p27 = scmp.eq.s32.totalorder %s26, 0
    %s29 = sadd.s32 %s28, 1
    %s30 = scalar_select %p27, %s28, %s29
    %p33 = pneg %p27
    %p34 = scmp.eq.s32.totalorder %s18, 1
    %p35 = por %p33, %p34
    %p36 = scmp.ne.s32.totalorder %s28, %s31
    %p37 = scmp.eq.s32.totalorder %s18, 0
    %p38 = por %p36, %p37
    %p39 = scmp.ne.s32.totalorder %s28, %s31
    %p40 = scmp.eq.s32.totalorder %s23, 1
    %p41 = por %p39, %p40
    %p42 = scmp.ne.s32.totalorder %s31, %s32
    %p43 = scmp.eq.s32.totalorder %s23, 0
    %p44 = por %p42, %p43
    %p45 = scmp.ne.s32.totalorder %s31, %s32
    %p46 = scmp.eq.s32.totalorder %s24, 1
    %p47 = por %p45, %p46
    %p49 = scmp.ne.s32.totalorder %s32, %s48
    %p50 = scmp.eq.s32.totalorder %s24, 0
    %p51 = por %p49, %p50
    %s53 = sadd.s32 %s52, 1
    %p56 = scmp.eq.s32.totalorder %s18, 1
    %p57 = scmp.ne.s32.totalorder %s52, %s54
    %p58 = scmp.eq.s32.totalorder %s18, 0
    %p59 = por %p57, %p58
    %p60 = scmp.ne.s32.totalorder %s52, %s54
    %p61 = scmp.eq.s32.totalorder %s23, 1
    %p62 = por %p60, %p61
    %p63 = scmp.ne.s32.totalorder %s54, %s55
    %p64 = scmp.eq.s32.totalorder %s23, 0
    %p65 = por %p63, %p64
    %p66 = scmp.ne.s32.totalorder %s54, %s55
    %p67 = scmp.eq.s32.totalorder %s24, 1
    %p68 = por %p66, %p67
    %p70 = scmp.ne.s32.totalorder %s55, %s69
    %p71 = scmp.eq.s32.totalorder %s24, 0
    %p72 = por %p70, %p71
    %s74 = sadd.s32 %s73, 1
    %p77 = scmp.eq.s32.totalorder %s18, 1
    %p78 = scmp.ne.s32.totalorder %s73, %s75
    %p79 = scmp.eq.s32.totalorder %s18, 0
    %p80 = por %p78, %p79
    %p81 = scmp.ne.s32.totalorder %s73, %s75
    %p82 = scmp.eq.s32.totalorder %s23, 1
    %p83 = por %p81, %p82
    %p84 = scmp.ne.s32.totalorder %s75, %s76
    %p85 = scmp.eq.s32.totalorder %s23, 0
    %p86 = por %p84, %p85
    %p87 = scmp.ne.s32.totalorder %s75, %s76
    %p88 = scmp.eq.s32.totalorder %s24, 1
    %p89 = por %p87, %p88
    %p91 = scmp.ne.s32.totalorder %s76, %s90
    %p92 = scmp.eq.s32.totalorder %s24, 0
    %p93 = por %p91, %p92
    %s95 = sadd.s32 %s94, 1
    %p98 = scmp.eq.s32.totalorder %s18, 1
    %p99 = scmp.ne.s32.totalorder %s94, %s96
    %p100 = scmp.eq.s32.totalorder %s18, 0
    %p101 = por %p99, %p100
    %p102 = scmp.ne.s32.totalorder %s94, %s96
    %p103 = scmp.eq.s32.totalorder %s23, 1
    %p104 = por %p102, %p103
    %p105 = scmp.ne.s32.totalorder %s96, %s97
    %p106 = scmp.eq.s32.totalorder %s23, 0
    %p107 = por %p105, %p106
    %p108 = scmp.ne.s32.totalorder %s96, %s97
    %p109 = scmp.eq.s32.totalorder %s24, 1
    %p110 = por %p108, %p109
    %p112 = scmp.ne.s32.totalorder %s97, %s111
    %p113 = scmp.eq.s32.totalorder %s24, 0
    %p114 = por %p112, %p113
    %s116 = sadd.s32 %s115, 1
    %p119 = scmp.eq.s32.totalorder %s18, 1
    %p120 = scmp.ne.s32.totalorder %s115, %s117
    %p121 = scmp.eq.s32.totalorder %s18, 0
    %p122 = por %p120, %p121
    %p123 = scmp.ne.s32.totalorder %s115, %s117
    %p124 = scmp.eq.s32.totalorder %s23, 1
    %p125 = por %p123, %p124
    %p126 = scmp.ne.s32.totalorder %s117, %s118
    %p127 = scmp.eq.s32.totalorder %s23, 0
    %p128 = por %p126, %p127
    %p129 = scmp.ne.s32.totalorder %s117, %s118
    %p130 = scmp.eq.s32.totalorder %s24, 1
    %p131 = por %p129, %p130
    %p133 = scmp.ne.s32.totalorder %s118, %s132
    %p134 = scmp.eq.s32.totalorder %s24, 0
    %p135 = por %p133, %p134
    %s137 = sadd.s32 %s136, 1
    %p140 = scmp.eq.s32.totalorder %s18, 1
    %p141 = scmp.ne.s32.totalorder %s136, %s138
    %p142 = scmp.eq.s32.totalorder %s18, 0
    %p143 = por %p141, %p142
    %p144 = scmp.ne.s32.totalorder %s136, %s138
    %p145 = scmp.eq.s32.totalorder %s23, 1
    %p146 = por %p144, %p145
    %p147 = scmp.ne.s32.totalorder %s138, %s139
    %p148 = scmp.eq.s32.totalorder %s23, 0
    %p149 = por %p147, %p148
    %p150 = scmp.ne.s32.totalorder %s138, %s139
    %p151 = scmp.eq.s32.totalorder %s24, 1
    %p152 = por %p150, %p151
    %p154 = scmp.ne.s32.totalorder %s139, %s153
    %p155 = scmp.eq.s32.totalorder %s24, 0
    %p156 = por %p154, %p155
    %s158 = sadd.s32 %s157, 1
    %p161 = scmp.eq.s32.totalorder %s18, 1
    %p162 = scmp.ne.s32.totalorder %s157, %s159
    %p163 = scmp.eq.s32.totalorder %s18, 0
    %p164 = por %p162, %p163
    %p165 = scmp.ne.s32.totalorder %s157, %s159
    %p166 = scmp.eq.s32.totalorder %s23, 1
    %p167 = por %p165, %p166
    %p168 = scmp.ne.s32.totalorder %s159, %s160
    %p169 = scmp.eq.s32.totalorder %s23, 0
    %p170 = por %p168, %p169
    %p171 = scmp.ne.s32.totalorder %s159, %s160
    %p172 = scmp.eq.s32.totalorder %s24, 1
    %p173 = por %p171, %p172
    %p175 = scmp.ne.s32.totalorder %s160, %s174
    %p176 = scmp.eq.s32.totalorder %s24, 0
    %p177 = por %p175, %p176
    %s179 = sadd.s32 %s178, 1
    %p182 = scmp.eq.s32.totalorder %s18, 1
    %p183 = scmp.ne.s32.totalorder %s178, %s180
    %p184 = scmp.eq.s32.totalorder %s18, 0
    %p185 = por %p183, %p184
    %p186 = scmp.ne.s32.totalorder %s178, %s180
    %p187 = scmp.eq.s32.totalorder %s23, 1
    %p188 = por %p186, %p187
    %p189 = scmp.ne.s32.totalorder %s180, %s181
    %p190 = scmp.eq.s32.totalorder %s23, 0
    %p191 = por %p189, %p190
    %p192 = scmp.ne.s32.totalorder %s180, %s181
    %p193 = scmp.eq.s32.totalorder %s24, 1
    %p194 = por %p192, %p193
    %p196 = scmp.ne.s32.totalorder %s181, %s195
    %p197 = scmp.eq.s32.totalorder %s24, 0
    %p198 = por %p196, %p197
    %s200 = sadd.s32 %s199, 1
    %p203 = scmp.eq.s32.totalorder %s18, 1
    %p204 = scmp.ne.s32.totalorder %s199, %s201
    %p205 = scmp.eq.s32.totalorder %s18, 0
    %p206 = por %p204, %p205
    %p207 = scmp.ne.s32.totalorder %s199, %s201
    %p208 = scmp.eq.s32.totalorder %s23, 1
    %p209 = por %p207, %p208
    %p210 = scmp.ne.s32.totalorder %s201, %s202
    %p211 = scmp.eq.s32.totalorder %s23, 0
    %p212 = por %p210, %p211
    %p213 = scmp.ne.s32.totalorder %s201, %s202
    %p214 = scmp.eq.s32.totalorder %s24, 1
    %p215 = por %p213, %p214
    %p217 = scmp.ne.s32.totalorder %s202, %s216
    %p218 = scmp.eq.s32.totalorder %s24, 0
    %p219 = por %p217, %p218
    %s221 = sadd.s32 %s220, 1
    %p224 = scmp.eq.s32.totalorder %s18, 1
    %p225 = scmp.ne.s32.totalorder %s220, %s222
    %p226 = scmp.eq.s32.totalorder %s18, 0
    %p227 = por %p225, %p226
    %p228 = scmp.ne.s32.totalorder %s220, %s222
    %p229 = scmp.eq.s32.totalorder %s23, 1
    %p230 = por %p228, %p229
    %p231 = scmp.ne.s32.totalorder %s222, %s223
    %p232 = scmp.eq.s32.totalorder %s23, 0
    %p233 = por %p231, %p232
    %p234 = scmp.ne.s32.totalorder %s222, %s223
    %p235 = scmp.eq.s32.totalorder %s24, 1
    %p236 = por %p234, %p235
    %p238 = scmp.ne.s32.totalorder %s223, %s237
    %p239 = scmp.eq.s32.totalorder %s24, 0
    %p240 = por %p238, %p239
    %s242 = sadd.s32 %s241, 1
    %p245 = scmp.eq.s32.totalorder %s18, 1
    %p246 = scmp.ne.s32.totalorder %s241, %s243
    %p247 = scmp.eq.s32.totalorder %s18, 0
    %p248 = por %p246, %p247
    %p249 = scmp.ne.s32.totalorder %s241, %s243
    %p250 = scmp.eq.s32.totalorder %s23, 1
    %p251 = por %p249, %p250
    %p252 = scmp.ne.s32.totalorder %s243, %s244
    %p253 = scmp.eq.s32.totalorder %s23, 0
    %p254 = por %p252, %p253
    %p255 = scmp.ne.s32.totalorder %s243, %s244
    %p256 = scmp.eq.s32.totalorder %s24, 1
    %p257 = por %p255, %p256
    %p259 = scmp.ne.s32.totalorder %s244, %s258
    %p260 = scmp.eq.s32.totalorder %s24, 0
    %p261 = por %p259, %p260
    %s263 = sadd.s32 %s262, 1
    %p266 = scmp.eq.s32.totalorder %s18, 1
    %p267 = scmp.ne.s32.totalorder %s262, %s264
    %p268 = scmp.eq.s32.totalorder %s18, 0
    %p269 = por %p267, %p268
    %p270 = scmp.ne.s32.totalorder %s262, %s264
    %p271 = scmp.eq.s32.totalorder %s23, 1
    %p272 = por %p270, %p271
    %p273 = scmp.ne.s32.totalorder %s264, %s265
    %p274 = scmp.eq.s32.totalorder %s23, 0
    %p275 = por %p273, %p274
    %p276 = scmp.ne.s32.totalorder %s264, %s265
    %p277 = scmp.eq.s32.totalorder %s24, 1
    %p278 = por %p276, %p277
    %p280 = scmp.ne.s32.totalorder %s265, %s279
    %p281 = scmp.eq.s32.totalorder %s24, 0
    %p282 = por %p280, %p281
    %s283 = ssub.s32 %s18, %s25
    %p284 = scmp.eq.s32.totalorder %s283, 0
    %s286 = sadd.s32 %s285, 1
    %s287 = scalar_select %p284, %s285, %s286
    %p290 = pneg %p284
    %p291 = scmp.eq.s32.totalorder %s18, 1
    %p292 = por %p290, %p291
    %p293 = scmp.ne.s32.totalorder %s285, %s288
    %p294 = scmp.eq.s32.totalorder %s18, 0
    %p295 = por %p293, %p294
    %p296 = scmp.ne.s32.totalorder %s285, %s288
    %p297 = scmp.eq.s32.totalorder %s23, 1
    %p298 = por %p296, %p297
    %p299 = scmp.ne.s32.totalorder %s288, %s289
    %p300 = scmp.eq.s32.totalorder %s23, 0
    %p301 = por %p299, %p300
    %p302 = scmp.ne.s32.totalorder %s288, %s289
    %p303 = scmp.eq.s32.totalorder %s24, 1
    %p304 = por %p302, %p303
    %p306 = scmp.ne.s32.totalorder %s289, %s305
    %p307 = scmp.eq.s32.totalorder %s24, 0
    %p308 = por %p306, %p307
    %p309 = scmp.le.s32.totalorder 1, %s18
    %p310 = scmp.lt.s32.totalorder %s18, 3
    %p311 = pnand %p309, %p310
    %p312 = pneg %p311
    // Predicated region
    $region9: #{tpu_custom_call.1} parent=5 // pred_check
      _
    $region10: #{tpu_custom_call.1} parent=5 // pred_check_branch
      %314 = sbr.rel (%p311) target = $region12
    $region11: #{tpu_custom_call.1} parent=5 // pred_region
      %s315 = ssub.s32 %s18, 1
      // Predicated region
      $region13: #{tpu_custom_call.1} parent=11 // pred_check
        %p316 = pneg %p65
      $region14: #{tpu_custom_call.1} parent=11 // pred_check_branch
        %318 = sbr.rel (%p316) target = $region16
      $region15: #{tpu_custom_call.1} parent=11 // pred_region
        _
      $region16: #{tpu_custom_call.1} parent=11 // pred_fallthru
        _
      // Predicated region
      $region17: #{tpu_custom_call.1} parent=11 // pred_check
        %p319 = pneg %p86
      $region18: #{tpu_custom_call.1} parent=11 // pred_check_branch
        %321 = sbr.rel (%p319) target = $region20
      $region19: #{tpu_custom_call.1} parent=11 // pred_region
        _
      $region20: #{tpu_custom_call.1} parent=11 // pred_fallthru
        _
      // Predicated region
      $region21: #{tpu_custom_call.1} parent=11 // pred_check
        %p322 = pneg %p107
      $region22: #{tpu_custom_call.1} parent=11 // pred_check_branch
        %324 = sbr.rel (%p322) target = $region24
      $region23: #{tpu_custom_call.1} parent=11 // pred_region
        _
      $region24: #{tpu_custom_call.1} parent=11 // pred_fallthru
        _
      // Predicated region
      $region25: #{tpu_custom_call.1} parent=11 // pred_check
        %p325 = pneg %p128
      $region26: #{tpu_custom_call.1} parent=11 // pred_check_branch
        %327 = sbr.rel (%p325) target = $region28
      $region27: #{tpu_custom_call.1} parent=11 // pred_region
        _
      $region28: #{tpu_custom_call.1} parent=11 // pred_fallthru
        _
      // Predicated region
      $region29: #{tpu_custom_call.1} parent=11 // pred_check
        %p328 = pneg %p149
      $region30: #{tpu_custom_call.1} parent=11 // pred_check_branch
        %330 = sbr.rel (%p328) target = $region32
      $region31: #{tpu_custom_call.1} parent=11 // pred_region
        _
      $region32: #{tpu_custom_call.1} parent=11 // pred_fallthru
        _
      // Predicated region
      $region33: #{tpu_custom_call.1} parent=11 // pred_check
        %p331 = pneg %p170
      $region34: #{tpu_custom_call.1} parent=11 // pred_check_branch
        %333 = sbr.rel (%p331) target = $region36
      $region35: #{tpu_custom_call.1} parent=11 // pred_region
        _
      $region36: #{tpu_custom_call.1} parent=11 // pred_fallthru
        _
      // Predicated region
      $region37: #{tpu_custom_call.1} parent=11 // pred_check
        %p334 = pneg %p191
      $region38: #{tpu_custom_call.1} parent=11 // pred_check_branch
        %336 = sbr.rel (%p334) target = $region40
      $region39: #{tpu_custom_call.1} parent=11 // pred_region
        _
      $region40: #{tpu_custom_call.1} parent=11 // pred_fallthru
        _
      // Predicated region
      $region41: #{tpu_custom_call.1} parent=11 // pred_check
        %p337 = pneg %p212
      $region42: #{tpu_custom_call.1} parent=11 // pred_check_branch
        %339 = sbr.rel (%p337) target = $region44
      $region43: #{tpu_custom_call.1} parent=11 // pred_region
        _
      $region44: #{tpu_custom_call.1} parent=11 // pred_fallthru
        _
      // Predicated region
      $region45: #{tpu_custom_call.1} parent=11 // pred_check
        %p340 = pneg %p233
      $region46: #{tpu_custom_call.1} parent=11 // pred_check_branch
        %342 = sbr.rel (%p340) target = $region48
      $region47: #{tpu_custom_call.1} parent=11 // pred_region
        _
      $region48: #{tpu_custom_call.1} parent=11 // pred_fallthru
        _
      // Predicated region
      $region49: #{tpu_custom_call.1} parent=11 // pred_check
        %p343 = pneg %p254
      $region50: #{tpu_custom_call.1} parent=11 // pred_check_branch
        %345 = sbr.rel (%p343) target = $region52
      $region51: #{tpu_custom_call.1} parent=11 // pred_region
        _
      $region52: #{tpu_custom_call.1} parent=11 // pred_fallthru
        _
      // Predicated region
      $region53: #{tpu_custom_call.1} parent=11 // pred_check
        %p346 = pneg %p275
      $region54: #{tpu_custom_call.1} parent=11 // pred_check_branch
        %348 = sbr.rel (%p346) target = $region56
      $region55: #{tpu_custom_call.1} parent=11 // pred_region
        _
      $region56: #{tpu_custom_call.1} parent=11 // pred_fallthru
        _
    $region12: #{tpu_custom_call.1} parent=5 // pred_fallthru
      _
    %p349 = scmp.lt.s32.totalorder %s18, 2
    // Predicated region
    $region57: #{tpu_custom_call.1} parent=5 // pred_check
      %p350 = pneg %p349
    $region58: #{tpu_custom_call.1} parent=5 // pred_check_branch
      %352 = sbr.rel (%p350) target = $region60
    $region59: #{tpu_custom_call.1} parent=5 // pred_region
      // Predicated region
      $region61: #{tpu_custom_call.1} parent=59 // pred_check
        %p353 = pneg %p38
      $region62: #{tpu_custom_call.1} parent=59 // pred_check_branch
        %355 = sbr.rel (%p353) target = $region64
      $region63: #{tpu_custom_call.1} parent=59 // pred_region
        %s356 = smul.u32 2, %s18
        %p357 = scmp.lt.s32.totalorder %s356, 3
        %s358 = scalar_select %p357, %s356, 3
        %s359 = smul.addr %s358, 4
        %s360 = scalar_lea.vmem %s0, %s359
        %s361 = smul.u32 2, %s18
      $region64: #{tpu_custom_call.1} parent=59 // pred_fallthru
        _
    $region60: #{tpu_custom_call.1} parent=5 // pred_fallthru
      _
    %p362 = scmp.le.s32.totalorder 1, %s18
    %p363 = scmp.lt.s32.totalorder %s18, 3
    %p364 = pnand %p362, %p363
    %p365 = pneg %p364
    // Predicated region
    $region65: #{tpu_custom_call.1} parent=5 // pred_check
      _
    $region66: #{tpu_custom_call.1} parent=5 // pred_check_branch
      %367 = sbr.rel (%p364) target = $region68
    $region67: #{tpu_custom_call.1} parent=5 // pred_region
      %s368 = ssub.s32 %s18, 1
      %s369 = smul.u32 2, %s23
      %p370 = scmp.lt.s32.totalorder %s369, 3
      %s371 = scalar_select %p370, %s369, 3
      %s372 = smul.addr %s371, 4
      %s373 = scalar_lea.vmem %s0, %s372
      %p374 = pneg %p44
      %p375 = pneg %p41
      %p376 = pneg %p65
      %p377 = pneg %p62
      %p378 = pneg %p86
      %p379 = pneg %p83
      %p380 = pneg %p107
      %p381 = pneg %p104
      %p382 = pneg %p128
      %p383 = pneg %p125
      %p384 = pneg %p149
      %p385 = pneg %p146
      %p386 = pneg %p170
      %p387 = pneg %p167
      %p388 = pneg %p191
      %p389 = pneg %p188
      %p390 = pneg %p212
      %p391 = pneg %p209
      %p392 = pneg %p233
      %p393 = pneg %p230
      %p394 = pneg %p254
      %p395 = pneg %p251
      %p396 = pneg %p275
      %p397 = pneg %p272
      %p398 = pneg %p301
      %p399 = pneg %p298
      %s400 = smul.u32 2, %s23
      %p401 = scmp.lt.s32.totalorder %s400, 3
      %s402 = scalar_select %p401, %s400, 3
      %s403 = smul.addr %s402, 8
      %s404 = scalar_lea.vmem %s12, %s403
      %s405 = smul.u32 2, %s23
      %p406 = scmp.lt.s32.totalorder %s405, 3
      %s407 = scalar_select %p406, %s405, 3
      %s408 = smul.addr %s407, 4
      %s409 = scalar_lea.vmem %s0, %s408
      %s410 = smul.u32 2, %s23
      %s411 = smul.u32 2, %s23
      %p412 = scmp.lt.s32.totalorder %s411, 3
      %s413 = scalar_select %p412, %s411, 3
      %s414 = smul.addr %s413, 8
      %s415 = scalar_lea.vmem %s12, %s414
      %s416 = smul.u32 2, %s23
      %v418 = vld [vmem:[%s409] sm:$0xf]
      %v419 = vld [vmem:[%s409 + $0x4] sm:$0xf]
      %v420 = vld [vmem:[%s1] sm:$0xf]
      %v421 = vld [vmem:[%s1 + $0x4] sm:$0xf]
      %v422 = vld [vmem:[%s2] sm:$0x1]
      %v424 = vlaneseq
      %v425 = vshrl.u32 %v424, 7
      %v426 = vsub.s32 0, %v425
      %v427 = vrot.slane %v422, %v426
      %v431 = vunpack.c.l.b16 %v418
      %v432 = vunpack.c.l.b16 %v419
      %v433 = vpack.c.b16 %v432, %v431
      %v436 = vunpack.c.l.b16 %v420
      %v437 = vunpack.c.l.b16 %v421
      %v438 = vpack.c.b16 %v437, %v436
      %vm440 = vcmask 130048
      %v442 = vsel %vm440, %v433, 0
      %444 = vmatprep.subr.bf16.mxu0 0
      %445 = vmatpush1.bf16.msra.mxu0 %v438
      %446 = vmatprep.subr.bf16.mxu0 0
      %447 = vmatpush1.bf16.msra.mxu0 0
      %448 = vmatprep.subr.bf16.mxu0 0
      %449 = vmatpush1.bf16.msra.mxu0 0
      %450 = vmatprep.subr.bf16.mxu0 0
      %451 = vmatpush1.bf16.msra.mxu0 0
      %452 = vmatprep.subr.bf16.mxu0 0
      %453 = vmatpush1.bf16.msra.mxu0 0
      %454 = vmatprep.subr.bf16.mxu0 0
      %455 = vmatpush1.bf16.msra.mxu0 0
      %456 = vmatprep.subr.bf16.mxu0 0
      %457 = vmatpush1.bf16.msra.mxu0 0
      %458 = vmatprep.subr.bf16.mxu0 0
      %459 = vmatpush1.bf16.msra.mxu0 0
      %460 = vmatprep.subr.bf16.mxu0 0
      %461 = vmatpush1.bf16.msra.mxu0 0
      %462 = vmatprep.subr.bf16.mxu0 0
      %463 = vmatpush1.bf16.msra.mxu0 0
      %464 = vmatprep.subr.bf16.mxu0 0
      %465 = vmatpush1.bf16.msra.mxu0 0
      %466 = vmatprep.subr.bf16.mxu0 0
      %467 = vmatpush1.bf16.msra.mxu0 0
      %468 = vmatprep.subr.bf16.mxu0 0
      %469 = vmatpush1.bf16.msra.mxu0 0
      %470 = vmatprep.subr.bf16.mxu0 0
      %471 = vmatpush1.bf16.msra.mxu0 0
      %472 = vmatprep.subr.bf16.mxu0 0
      %473 = vmatpush1.bf16.msra.mxu0 0
      %474 = vmatprep.subr.bf16.mxu0 0
      %475 = vmatpush1.bf16.msra.mxu0 0
      %476 = vmatprep.mubr.bf16.mxu0 0
      %477 = vmatmul.mubr.bf16.gmra.mrb[0].mxu0 %v442
      %v478 = vpop.f32.mrb[0].mxu0
      %v479 = vadd.f32 %v427, %v478
      %v480 = vpop.f32.mrb[0].mxu0
      %v481 = vpop.f32.mrb[0].mxu0
      %v482 = vadd.f32 %v427, %v481
      %v483 = vpop.f32.mrb[0].mxu0
      %484 = vdwg.mxu0
      %v485 = vmax.f32 %v479, 0.0
      %v486 = vmax.f32 %v482, 0.0
      %v487 = vpack.c.bf16 %v486, %v485
      %v488 = vld [vmem:[%s3] sm:$0xf]
      %v489 = vld [vmem:[%s3 + $0x4] sm:$0xf]
      %v490 = vld [vmem:[%s3 + $0x8] sm:$0xf]
      %v491 = vld [vmem:[%s3 + $0xc] sm:$0xf]
      %v492 = vld [vmem:[%s4] sm:$0x1]
      %v494 = vlaneseq
      %v495 = vshrl.u32 %v494, 7
      %v496 = vsub.s32 0, %v495
      %v497 = vrot.slane %v492, %v496
      %v503 = vunpack.c.l.b16 %v488
      %v504 = vunpack.c.l.b16 %v489
      %v505 = vunpack.c.l.b16 %v490
      %v506 = vunpack.c.l.b16 %v491
      %v507 = vpack.c.b16 %v504, %v503
      %v508 = vpack.c.b16 %v506, %v505
      %vm511 = vcmask 261120
      %v513 = vsel %vm511, %v487, 0
      %515 = vmatprep.subr.bf16.mxu0 0
      %516 = vmatpush1.bf16.msra.mxu0 %v507
      %517 = vmatprep.subr.bf16.mxu0 0
      %518 = vmatpush1.bf16.msra.mxu0 %v508
      %519 = vmatprep.subr.bf16.mxu0 0
      %520 = vmatpush1.bf16.msra.mxu0 0
      %521 = vmatprep.subr.bf16.mxu0 0
      %522 = vmatpush1.bf16.msra.mxu0 0
      %523 = vmatprep.subr.bf16.mxu0 0
      %524 = vmatpush1.bf16.msra.mxu0 0
      %525 = vmatprep.subr.bf16.mxu0 0
      %526 = vmatpush1.bf16.msra.mxu0 0
      %527 = vmatprep.subr.bf16.mxu0 0
      %528 = vmatpush1.bf16.msra.mxu0 0
      %529 = vmatprep.subr.bf16.mxu0 0
      %530 = vmatpush1.bf16.msra.mxu0 0
      %531 = vmatprep.subr.bf16.mxu0 0
      %532 = vmatpush1.bf16.msra.mxu0 0
      %533 = vmatprep.subr.bf16.mxu0 0
      %534 = vmatpush1.bf16.msra.mxu0 0
      %535 = vmatprep.subr.bf16.mxu0 0
      %536 = vmatpush1.bf16.msra.mxu0 0
      %537 = vmatprep.subr.bf16.mxu0 0
      %538 = vmatpush1.bf16.msra.mxu0 0
      %539 = vmatprep.subr.bf16.mxu0 0
      %540 = vmatpush1.bf16.msra.mxu0 0
      %541 = vmatprep.subr.bf16.mxu0 0
      %542 = vmatpush1.bf16.msra.mxu0 0
      %543 = vmatprep.subr.bf16.mxu0 0
      %544 = vmatpush1.bf16.msra.mxu0 0
      %545 = vmatprep.subr.bf16.mxu0 0
      %546 = vmatpush1.bf16.msra.mxu0 0
      %547 = vmatprep.mubr.bf16.mxu0 0
      %548 = vmatmul.mubr.bf16.gmra.mrb[0].mxu0 %v513
      %v549 = vpop.f32.mrb[0].mxu0
      %v550 = vadd.f32 %v497, %v549
      %v551 = vpop.f32.mrb[0].mxu0
      %v552 = vpop.f32.mrb[0].mxu0
      %v553 = vadd.f32 %v497, %v552
      %v554 = vpop.f32.mrb[0].mxu0
      %555 = vdwg.mxu0
      %v556 = vadd.f32 %v485, %v550
      %v557 = vadd.f32 %v486, %v553
      %v558 = vld [vmem:[%s5] sm:$0xf]
      %v559 = vld [vmem:[%s5 + $0x4] sm:$0xf]
      %v560 = vld [vmem:[%s5 + $0x8] sm:$0xf]
      %v561 = vld [vmem:[%s5 + $0xc] sm:$0xf]
      %v562 = vld [vmem:[%s6] sm:$0x1]
      %v564 = vlaneseq
      %v565 = vshrl.u32 %v564, 7
      %v566 = vsub.s32 0, %v565
      %v567 = vrot.slane %v562, %v566
      %v573 = vunpack.c.l.b16 %v558
      %v574 = vunpack.c.l.b16 %v559
      %v575 = vunpack.c.l.b16 %v560
      %v576 = vunpack.c.l.b16 %v561
      %v577 = vpack.c.b16 %v574, %v573
      %v578 = vpack.c.b16 %v576, %v575
      %581 = vmatprep.subr.bf16.mxu0 0
      %582 = vmatpush1.bf16.msra.mxu0 %v577
      %583 = vmatprep.subr.bf16.mxu0 0
      %584 = vmatpush1.bf16.msra.mxu0 %v578
      %585 = vmatprep.subr.bf16.mxu0 0
      %586 = vmatpush1.bf16.msra.mxu0 0
      %587 = vmatprep.subr.bf16.mxu0 0
      %588 = vmatpush1.bf16.msra.mxu0 0
      %589 = vmatprep.subr.bf16.mxu0 0
      %590 = vmatpush1.bf16.msra.mxu0 0
      %591 = vmatprep.subr.bf16.mxu0 0
      %592 = vmatpush1.bf16.msra.mxu0 0
      %593 = vmatprep.subr.bf16.mxu0 0
      %594 = vmatpush1.bf16.msra.mxu0 0
      %595 = vmatprep.subr.bf16.mxu0 0
      %596 = vmatpush1.bf16.msra.mxu0 0
      %597 = vmatprep.subr.bf16.mxu0 0
      %598 = vmatpush1.bf16.msra.mxu0 0
      %599 = vmatprep.subr.bf16.mxu0 0
      %600 = vmatpush1.bf16.msra.mxu0 0
      %601 = vmatprep.subr.bf16.mxu0 0
      %602 = vmatpush1.bf16.msra.mxu0 0
      %603 = vmatprep.subr.bf16.mxu0 0
      %604 = vmatpush1.bf16.msra.mxu0 0
      %605 = vmatprep.subr.bf16.mxu0 0
      %606 = vmatpush1.bf16.msra.mxu0 0
      %607 = vmatprep.subr.bf16.mxu0 0
      %608 = vmatpush1.bf16.msra.mxu0 0
      %609 = vmatprep.subr.bf16.mxu0 0
      %610 = vmatpush1.bf16.msra.mxu0 0
      %611 = vmatprep.subr.bf16.mxu0 0
      %612 = vmatpush1.bf16.msra.mxu0 0
      %613 = vmatprep.mubr.bf16.mxu0 0
      %614 = vmatmul.mubr.bf16.gmra.mrb[0].mxu0 %v513
      %v615 = vpop.f32.mrb[0].mxu0
      %v616 = vadd.f32 %v567, %v615
      %v617 = vpop.f32.mrb[0].mxu0
      %v618 = vpop.f32.mrb[0].mxu0
      %v619 = vadd.f32 %v567, %v618
      %v620 = vpop.f32.mrb[0].mxu0
      %621 = vdwg.mxu0
      %v622 = vtanh.pop %v616
      %v623 = vtanh.pop %v619
      %v624 = vpack.c.bf16 %v557, %v556
      %v625 = vld [vmem:[%s7] sm:$0xf]
      %v626 = vld [vmem:[%s7 + $0x4] sm:$0xf]
      %v627 = vld [vmem:[%s7 + $0x8] sm:$0xf]
      %v628 = vld [vmem:[%s7 + $0xc] sm:$0xf]
      %v629 = vpack.c.bf16 %v623, %v622
      %v630 = vld [vmem:[%s8] sm:$0xf]
      %v631 = vld [vmem:[%s8 + $0x4] sm:$0xf]
      %v634 = vunpack.c.l.b16 %v630
      %v635 = vunpack.c.l.b16 %v631
      %v636 = vpack.c.b16 %v635, %v634
      %v639 = vsel %vm440, %v629, 0
      %641 = vmatprep.subr.bf16.mxu0 0
      %642 = vmatpush1.bf16.msra.mxu0 %v636
      %643 = vmatprep.subr.bf16.mxu0 0
      %644 = vmatpush1.bf16.msra.mxu0 0
      %645 = vmatprep.subr.bf16.mxu0 0
      %646 = vmatpush1.bf16.msra.mxu0 0
      %647 = vmatprep.subr.bf16.mxu0 0
      %648 = vmatpush1.bf16.msra.mxu0 0
      %649 = vmatprep.subr.bf16.mxu0 0
      %650 = vmatpush1.bf16.msra.mxu0 0
      %651 = vmatprep.subr.bf16.mxu0 0
      %652 = vmatpush1.bf16.msra.mxu0 0
      %653 = vmatprep.subr.bf16.mxu0 0
      %654 = vmatpush1.bf16.msra.mxu0 0
      %655 = vmatprep.subr.bf16.mxu0 0
      %656 = vmatpush1.bf16.msra.mxu0 0
      %657 = vmatprep.subr.bf16.mxu0 0
      %658 = vmatpush1.bf16.msra.mxu0 0
      %659 = vmatprep.subr.bf16.mxu0 0
      %660 = vmatpush1.bf16.msra.mxu0 0
      %661 = vmatprep.subr.bf16.mxu0 0
      %662 = vmatpush1.bf16.msra.mxu0 0
      %663 = vmatprep.subr.bf16.mxu0 0
      %664 = vmatpush1.bf16.msra.mxu0 0
      %665 = vmatprep.subr.bf16.mxu0 0
      %666 = vmatpush1.bf16.msra.mxu0 0
      %667 = vmatprep.subr.bf16.mxu0 0
      %668 = vmatpush1.bf16.msra.mxu0 0
      %669 = vmatprep.subr.bf16.mxu0 0
      %670 = vmatpush1.bf16.msra.mxu0 0
      %671 = vmatprep.subr.bf16.mxu0 0
      %672 = vmatpush1.bf16.msra.mxu0 0
      %673 = vmatprep.mubr.bf16.mxu0 0
      %674 = vmatmul.mubr.bf16.gmra.mrb[0].mxu0 %v639
      %v675 = vpop.f32.mrb[0].mxu0
      %v676 = vadd.f32 0.0, %v675
      %v677 = vpop.f32.mrb[0].mxu0
      %v678 = vpop.f32.mrb[0].mxu0
      %v679 = vadd.f32 0.0, %v678
      %v680 = vpop.f32.mrb[0].mxu0
      %681 = vdwg.mxu0
      %v686 = vunpack.c.l.b16 %v625
      %v687 = vunpack.c.l.b16 %v626
      %v688 = vunpack.c.l.b16 %v627
      %v689 = vunpack.c.l.b16 %v628
      %v690 = vpack.c.b16 %v687, %v686
      %v691 = vpack.c.b16 %v689, %v688
      %v695 = vsel %vm511, %v624, 0
      %697 = vmatprep.subr.bf16.mxu0 0
      %698 = vmatpush1.bf16.msra.mxu0 %v690
      %699 = vmatprep.subr.bf16.mxu0 0
      %700 = vmatpush1.bf16.msra.mxu0 %v691
      %701 = vmatprep.subr.bf16.mxu0 0
      %702 = vmatpush1.bf16.msra.mxu0 0
      %703 = vmatprep.subr.bf16.mxu0 0
      %704 = vmatpush1.bf16.msra.mxu0 0
      %705 = vmatprep.subr.bf16.mxu0 0
      %706 = vmatpush1.bf16.msra.mxu0 0
      %707 = vmatprep.subr.bf16.mxu0 0
      %708 = vmatpush1.bf16.msra.mxu0 0
      %709 = vmatprep.subr.bf16.mxu0 0
      %710 = vmatpush1.bf16.msra.mxu0 0
      %711 = vmatprep.subr.bf16.mxu0 0
      %712 = vmatpush1.bf16.msra.mxu0 0
      %713 = vmatprep.subr.bf16.mxu0 0
      %714 = vmatpush1.bf16.msra.mxu0 0
      %715 = vmatprep.subr.bf16.mxu0 0
      %716 = vmatpush1.bf16.msra.mxu0 0
      %717 = vmatprep.subr.bf16.mxu0 0
      %718 = vmatpush1.bf16.msra.mxu0 0
      %719 = vmatprep.subr.bf16.mxu0 0
      %720 = vmatpush1.bf16.msra.mxu0 0
      %721 = vmatprep.subr.bf16.mxu0 0
      %722 = vmatpush1.bf16.msra.mxu0 0
      %723 = vmatprep.subr.bf16.mxu0 0
      %724 = vmatpush1.bf16.msra.mxu0 0
      %725 = vmatprep.subr.bf16.mxu0 0
      %726 = vmatpush1.bf16.msra.mxu0 0
      %727 = vmatprep.subr.bf16.mxu0 0
      %728 = vmatpush1.bf16.msra.mxu0 0
      %729 = vmatprep.mubr.bf16.mxu0 0
      %730 = vmatmul.mubr.bf16.gmra.mrb[0].mxu0 %v695
      %v731 = vpop.f32.mrb[0].mxu0
      %v732 = vadd.f32 %v676, %v731
      %v733 = vpop.f32.mrb[0].mxu0
      %v734 = vpop.f32.mrb[0].mxu0
      %v735 = vadd.f32 %v679, %v734
      %v736 = vpop.f32.mrb[0].mxu0
      %737 = vdwg.mxu0
      %v738 = vld [vmem:[%s9] sm:$0x1]
      %v740 = vlaneseq
      %v741 = vshrl.u32 %v740, 7
      %v742 = vsub.s32 0, %v741
      %v743 = vrot.slane %v738, %v742
      %v745 = vadd.f32 %v732, %v743
      %v746 = vadd.f32 %v735, %v743
      %v747 = vmax.f32 %v745, 0.0
      %v748 = vmax.f32 %v746, 0.0
      %v749 = vpack.c.bf16 %v748, %v747
      %v750 = vld [vmem:[%s10] sm:$0xf]
      %v751 = vld [vmem:[%s10 + $0x4] sm:$0xf]
      %v752 = vld [vmem:[%s10 + $0x8] sm:$0xf]
      %v753 = vld [vmem:[%s10 + $0xc] sm:$0xf]
      %v754 = vld [vmem:[%s11] sm:$0x1]
      %v756 = vlaneseq
      %v757 = vshrl.u32 %v756, 7
      %v758 = vsub.s32 0, %v757
      %v759 = vrot.slane %v754, %v758
      %v765 = vunpack.c.l.b16 %v750
      %v766 = vunpack.c.l.b16 %v751
      %v767 = vunpack.c.l.b16 %v752
      %v768 = vunpack.c.l.b16 %v753
      %v769 = vpack.c.b16 %v766, %v765
      %v770 = vpack.c.b16 %v768, %v767
      %v774 = vsel %vm511, %v749, 0
      %776 = vmatprep.subr.bf16.mxu0 0
      %777 = vmatpush1.bf16.msra.mxu0 %v769
      %778 = vmatprep.subr.bf16.mxu0 0
      %779 = vmatpush1.bf16.msra.mxu0 %v770
      %780 = vmatprep.subr.bf16.mxu0 0
      %781 = vmatpush1.bf16.msra.mxu0 0
      %782 = vmatprep.subr.bf16.mxu0 0
      %783 = vmatpush1.bf16.msra.mxu0 0
      %784 = vmatprep.subr.bf16.mxu0 0
      %785 = vmatpush1.bf16.msra.mxu0 0
      %786 = vmatprep.subr.bf16.mxu0 0
      %787 = vmatpush1.bf16.msra.mxu0 0
      %788 = vmatprep.subr.bf16.mxu0 0
      %789 = vmatpush1.bf16.msra.mxu0 0
      %790 = vmatprep.subr.bf16.mxu0 0
      %791 = vmatpush1.bf16.msra.mxu0 0
      %792 = vmatprep.subr.bf16.mxu0 0
      %793 = vmatpush1.bf16.msra.mxu0 0
      %794 = vmatprep.subr.bf16.mxu0 0
      %795 = vmatpush1.bf16.msra.mxu0 0
      %796 = vmatprep.subr.bf16.mxu0 0
      %797 = vmatpush1.bf16.msra.mxu0 0
      %798 = vmatprep.subr.bf16.mxu0 0
      %799 = vmatpush1.bf16.msra.mxu0 0
      %800 = vmatprep.subr.bf16.mxu0 0
      %801 = vmatpush1.bf16.msra.mxu0 0
      %802 = vmatprep.subr.bf16.mxu0 0
      %803 = vmatpush1.bf16.msra.mxu0 0
      %804 = vmatprep.subr.bf16.mxu0 0
      %805 = vmatpush1.bf16.msra.mxu0 0
      %806 = vmatprep.subr.bf16.mxu0 0
      %807 = vmatpush1.bf16.msra.mxu0 0
      %808 = vmatprep.mubr.bf16.mxu0 0
      %809 = vmatmul.mubr.bf16.gmra.mrb[0].mxu0 %v774
      %v810 = vpop.f32.mrb[0].mxu0
      %v811 = vadd.f32 %v759, %v810
      %v812 = vpop.f32.mrb[0].mxu0
      %v813 = vpop.f32.mrb[0].mxu0
      %v814 = vadd.f32 %v759, %v813
      %v815 = vpop.f32.mrb[0].mxu0
      %816 = vdwg.mxu0
      %vm817 = vcmask 31744
      %818 = vst.msk [vmem:[%s415] sm:$0xff] %vm817, %v811
      %819 = vst.msk [vmem:[%s415 + $0x8] sm:$0xff] %vm817, %v814
      %s820 = smul.u32 2, %s23
      %p821 = scmp.lt.s32.totalorder %s820, 3
      %s822 = scalar_select %p821, %s820, 3
      %s823 = smul.addr %s822, 8
      %s824 = scalar_lea.vmem %s12, %s823
      // Predicated region
      $region69: #{tpu_custom_call.1} parent=67 // pred_check
        %p825 = pneg %p298
      $region70: #{tpu_custom_call.1} parent=67 // pred_check_branch
        %827 = sbr.rel (%p825) target = $region72
      $region71: #{tpu_custom_call.1} parent=67 // pred_region
        %s828 = smul.u32 2, %s23
      $region72: #{tpu_custom_call.1} parent=67 // pred_fallthru
        _
    $region68: #{tpu_custom_call.1} parent=5 // pred_fallthru
      _
    %p829 = scmp.le.s32.totalorder 2, %s18
    // Predicated region
    $region73: #{tpu_custom_call.1} parent=5 // pred_check
      %p830 = pneg %p829
    $region74: #{tpu_custom_call.1} parent=5 // pred_check_branch
      %832 = sbr.rel (%p830) target = $region76
    $region75: #{tpu_custom_call.1} parent=5 // pred_region
      %s833 = ssub.s32 %s18, 2
      // Predicated region
      $region77: #{tpu_custom_call.1} parent=75 // pred_check
        %p834 = pneg %p304
      $region78: #{tpu_custom_call.1} parent=75 // pred_check_branch
        %836 = sbr.rel (%p834) target = $region80
      $region79: #{tpu_custom_call.1} parent=75 // pred_region
        %s837 = smul.u32 2, %s24
        %p838 = scmp.lt.s32.totalorder %s837, 3
        %s839 = scalar_select %p838, %s837, 3
        %s840 = smul.addr %s839, 8
        %s841 = scalar_lea.vmem %s12, %s840
      $region80: #{tpu_custom_call.1} parent=75 // pred_fallthru
        _
    $region76: #{tpu_custom_call.1} parent=5 // pred_fallthru
      _
  $region6: #{tpu_custom_call.1} parent=0 // loop_footer
    %s22 = sadd.s32 1, %s18
  $region7: #{tpu_custom_call.1} parent=0 // loop_footer_branch
    %17 = sbr.rel target = $region3
  $region8: #{tpu_custom_call.1} parent=0 // loop_exit
    _

</llo_original>
